<compile_context>
chip_gen: v5e
topology: v5e:2x2
jax: 0.10.0
libtpu: 0.0.40
codegen_flags: <defaults>
</compile_context>

<pallas_src>
import functools

import jax
import jax.numpy as jnp
from jax.experimental import pallas as pl
from jax.experimental.pallas import tpu as pltpu

_MIB = 1024 * 1024


def _cdiv(a, b):
    return -(-a // b)


def _round_up(x, m):
    return ((x + m - 1) // m) * m


def _vmem_capacity_bytes():
    """Physical VMEM per TensorCore; conservative 64 MiB (v7x) on failure."""
    try:
        info = pltpu.get_tpu_info()
        cap = int(getattr(info, "vmem_capacity_bytes", 0) or 0)
        if cap > 0:
            return cap
    except Exception:
        pass
    try:
        kind = jax.devices()[0].device_kind.lower()
        if "v5" in kind or "v6" in kind:
            return 128 * _MIB
    except Exception:
        pass
    return 64 * _MIB


# ---------------------------------------------------------------------------
# Kernels
# ---------------------------------------------------------------------------
def _ffn_kernel_acc(x_ref, w1_ref, b1_ref, w2_ref, b2_ref, o_ref, acc_ref):
    """Variant with a separate f32 VMEM accumulator (non-f32 output dtypes)."""
    h_idx = pl.program_id(1)

    @pl.when(h_idx == 0)
    def _():
        acc_ref[...] = jnp.zeros_like(acc_ref)

    x = x_ref[...].astype(w1_ref.dtype)                       # cast in-kernel
    h = jnp.dot(x, w1_ref[...], preferred_element_type=jnp.float32)
    h = jnp.maximum(h + b1_ref[...], 0.0)                     # bias + ReLU (f32)
    acc_ref[...] += jnp.dot(h.astype(w2_ref.dtype), w2_ref[...],
                            preferred_element_type=jnp.float32)

    @pl.when(h_idx == pl.num_programs(1) - 1)
    def _():
        o_ref[...] = (acc_ref[...] + b2_ref[...]).astype(o_ref.dtype)


def _ffn_kernel_f32out(x_ref, w1_ref, b1_ref, w2_ref, b2_ref, o_ref):
    """f32 output: accumulate directly into the resident output block."""
    h_idx = pl.program_id(1)

    x = x_ref[...].astype(w1_ref.dtype)
    h = jnp.dot(x, w1_ref[...], preferred_element_type=jnp.float32)
    h = jnp.maximum(h + b1_ref[...], 0.0)
    partial = jnp.dot(h.astype(w2_ref.dtype), w2_ref[...],
                      preferred_element_type=jnp.float32)

    @pl.when(h_idx == 0)
    def _():
        o_ref[...] = partial

    @pl.when(h_idx > 0)
    def _():
        o_ref[...] += partial

    @pl.when(h_idx == pl.num_programs(1) - 1)
    def _():
        o_ref[...] += b2_ref[...]


# ---------------------------------------------------------------------------
# Tiling policy
# ---------------------------------------------------------------------------
def _choose_tiling(rows, E, H, *, x_isz, w_isz, o_isz, need_acc, vmem_cap,
                   block_rows=None, block_h=None):
    # Generation-aware targets: v5e/v6e (128 MiB VMEM) vs v7x (64 MiB, 2 TCs).
    if vmem_cap >= 100 * _MIB:
        tgt_br, tgt_bh = 1024, 512          # compute-bound weight stream on v6e
        split_rows_for_cores = False        # single TensorCore per chip
    else:
        tgt_br, tgt_bh = 512, 256           # fits under 64 MiB, >=310 FLOP/B
        split_rows_for_cores = True         # v7x: 2 TensorCores per chip
    if block_rows is not None:
        tgt_br = max(8, _round_up(block_rows, 8))
    if block_h is not None:
        tgt_bh = block_h
    budget = int(vmem_cap * 0.80)           # headroom for compiler temps

    def est(br, bh):
        # Double-buffered input / weight / output tiles + intermediates + acc.
        return (2 * br * E * x_isz                     # x tile
                + 2 * (E * bh + bh * E) * w_isz        # W1 / W2 tiles
                + 2 * bh * 4 + 2 * E * 4               # b1 / b2
                + 2 * br * E * o_isz                   # output tile
                + (br * E * 4 if need_acc else 0)      # f32 accumulator
                + br * bh * (4 + w_isz))               # h (f32) + cast copy

    # ---- row tile: large (multiple of 256 when big) to amortize weights ----
    br = tgt_br if rows >= tgt_br else _round_up(rows, 8)
    if split_rows_for_cores and rows >= 256 and _cdiv(rows, br) < 2:
        br = max(128, _round_up(_cdiv(rows, 2), 128))  # give both TCs work

    # ---- hidden tile: always a divisor of H (multiple of 128 if streamed) --
    def h_candidates():
        cands = []
        if H <= tgt_bh:
            cands.append(H)
        c = (min(tgt_bh, H) // 128) * 128
        while c >= 128:
            if H % c == 0:
                cands.append(c)
            c -= 128
        if not cands:
            cands.append(H)                 # odd small H: single full tile
        out, seen = [], set()
        for c in cands:
            if c not in seen:
                seen.add(c)
                out.append(c)
        return out

    while True:
        if est(br, H) <= budget:
            bh = H                          # weights fully resident: 1 fetch
            break
        bh = None
        for c in h_candidates():
            if est(br, c) <= budget:
                bh = c
                break
        if bh is not None:
            break
        if br > 128:                        # shrink row tile and retry
            br = _round_up(br // 2, 8)
        else:
            bh = h_candidates()[-1]         # last resort: smallest valid tile
            break

    assert H % bh == 0, "hidden tile must divide H"
    vmem_limit = int(min(vmem_cap * 0.90,
                         max(est(br, bh) * 1.4, 32 * _MIB)))
    return br, bh, vmem_limit


# ---------------------------------------------------------------------------
# pallas_call wrapper
# ---------------------------------------------------------------------------
@functools.partial(jax.jit, static_argnames=("br", "bh", "vmem_limit"))
def _ffn_pallas(x, w1, b1, w2, b2, *, br, bh, vmem_limit):
    B, T, E = x.shape
    H = w1.shape[1]
    rows = B * T
    out_dtype = x.dtype

    x2d = x.reshape(rows, E)                       # metadata-only reshape
    b1_2d = b1.reshape(1, H).astype(jnp.float32)   # tiny; f32 bias add
    b2_2d = b2.reshape(1, E).astype(jnp.float32)

    grid = (_cdiv(rows, br), H // bh)
    n_row_tiles, n_h = grid

    # Advisory cost estimate so XLA schedules surrounding ops sensibly.
    flops = 4 * rows * E * H
    w_bytes = 2 * E * H * w1.dtype.itemsize
    bytes_accessed = int(rows * E * (x.dtype.itemsize + out_dtype.itemsize)
                         + (w_bytes if n_h == 1 else w_bytes * n_row_tiles)
                         + (H + E) * 4)
    cost = pl.CostEstimate(flops=flops, bytes_accessed=bytes_accessed,
                           transcendentals=0)

    use_f32out = out_dtype == jnp.float32
    kernel = _ffn_kernel_f32out if use_f32out else _ffn_kernel_acc
    scratch = [] if use_f32out else [pltpu.VMEM((br, E), jnp.float32)]

    out2d = pl.pallas_call(
        kernel,
        out_shape=jax.ShapeDtypeStruct((rows, E), out_dtype),
        grid_spec=pltpu.PrefetchScalarGridSpec(
            num_scalar_prefetch=0,
            grid=grid,
            in_specs=[
                pl.BlockSpec((br, E), lambda i, h: (i, 0)),   # x row tile
                pl.BlockSpec((E, bh), lambda i, h: (0, h)),   # W1 H-tile
                pl.BlockSpec((1, bh), lambda i, h: (0, h)),   # b1 H-tile
                pl.BlockSpec((bh, E), lambda i, h: (h, 0)),   # W2 H-tile
                pl.BlockSpec((1, E), lambda i, h: (0, 0)),    # b2
            ],
            out_specs=pl.BlockSpec((br, E), lambda i, h: (i, 0)),
            scratch_shapes=scratch,
        ),
        compiler_params=pltpu.CompilerParams(
            dimension_semantics=("parallel", "arbitrary"),
            vmem_limit_bytes=vmem_limit),
        cost_estimate=cost,
    )(x2d, w1, b1_2d, w2, b2_2d)

    return out2d.reshape(B, T, E)


def ffn_forward(x, w1, b1, w2, b2, *, block_rows=None, block_h=None):
    """FFN forward.  x: [B, T, E]; w1: [E, 4E]; b1: [4E]; w2: [4E, E]; b2: [E].

    MXU compute dtype follows the weights' dtype -- store weights in bf16 for
    best throughput (cast once at init, not per call).  Dropout is identity
    (eval mode).
    """
    B, T, E = x.shape
    H = w1.shape[1]
    rows = B * T

    br, bh, vmem_limit = _choose_tiling(
        rows, E, H,
        x_isz=x.dtype.itemsize,
        w_isz=w1.dtype.itemsize,
        o_isz=x.dtype.itemsize,
        need_acc=(x.dtype != jnp.float32),
        vmem_cap=_vmem_capacity_bytes(),
        block_rows=block_rows, block_h=block_h)

    return _ffn_pallas(x, w1, b1, w2, b2, br=br, bh=bh, vmem_limit=vmem_limit)


def ffn_reference(x, w1, b1, w2, b2):
    h = jnp.maximum(x @ w1 + b1, 0.0)
    return h @ w2 + b2


if __name__ == "__main__":
    # Small shapes consistent with a transformer FFN block.
    B, T, n_embed = 2, 8, 32
    hidden = 4 * n_embed  # 128

    key = jax.random.PRNGKey(0)
    kx, k1, k2, k3, k4 = jax.random.split(key, 5)

    x = jax.random.normal(kx, (B, T, n_embed), dtype=jnp.float32)

    # PyTorch Linear stores (out, in); we keep the transposed (in, out) layout.
    bound1 = 1.0 / (n_embed ** 0.5)
    w1 = jax.random.uniform(k1, (n_embed, hidden), jnp.float32, -bound1, bound1)
    b1 = jax.random.uniform(k2, (hidden,), jnp.float32, -bound1, bound1)
    bound2 = 1.0 / (hidden ** 0.5)
    w2 = jax.random.uniform(k3, (hidden, n_embed), jnp.float32, -bound2, bound2)
    b2 = jax.random.uniform(k4, (n_embed,), jnp.float32, -bound2, bound2)

    # Store weights in the MXU compute dtype once, at init (not per call).
    w1_bf16 = w1.astype(jnp.bfloat16)
    w2_bf16 = w2.astype(jnp.bfloat16)

    out = ffn_forward(x, w1_bf16, b1, w2_bf16, b2)
    out = jax.block_until_ready(out)

    ref = ffn_reference(x, w1, b1, w2, b2)
    assert out.shape == (B, T, n_embed)
    assert out.dtype == x.dtype
    # bf16 MXU matmuls with f32 accumulation -> relaxed tolerance vs f32 ref.
    assert jnp.allclose(out, ref, atol=2e-2, rtol=2e-2), "mismatch vs reference"

    print("KERNEL_OK")
</pallas_src>

<mosaic_0001>
module attributes {stable_mosaic.version = 11 : i64} {
  func.func @_ffn_kernel_f32out(%arg0: i32, %arg1: i32, %arg2: memref<16x32xf32, #tpu.memory_space<vmem>>, %arg3: memref<32x128xbf16, #tpu.memory_space<vmem>>, %arg4: memref<1x128xf32, #tpu.memory_space<vmem>>, %arg5: memref<128x32xbf16, #tpu.memory_space<vmem>>, %arg6: memref<1x32xf32, #tpu.memory_space<vmem>>, %arg7: memref<16x32xf32, #tpu.memory_space<vmem>>) attributes {dimension_semantics = [#tpu.dimension_semantics<parallel>, #tpu.dimension_semantics<arbitrary>], iteration_bounds = array<i64: 1, 1>, scalar_prefetch = 0 : i64, scratch_operands = 0 : i64, tpu.core_type = #tpu.core_type<tc>, window_params = [{transform_indices = @transform_0, window_bounds = array<i64: 16, 32>}, {transform_indices = @transform_1, window_bounds = array<i64: 32, 128>}, {transform_indices = @transform_2, window_bounds = array<i64: 1, 128>}, {transform_indices = @transform_3, window_bounds = array<i64: 128, 32>}, {pipeline_mode = #tpu.pipeline_mode<synchronous>, transform_indices = @transform_4, window_bounds = array<i64: 1, 32>}, {transform_indices = @transform_5, window_bounds = array<i64: 16, 32>}]} {
    %c0 = arith.constant 0 : index
    %c0_0 = arith.constant 0 : index
    %0 = vector.load %arg2[%c0, %c0_0] : memref<16x32xf32, #tpu.memory_space<vmem>>, vector<16x32xf32>
    %1 = arith.truncf %0 : vector<16x32xf32> to vector<16x32xbf16>
    %c0_1 = arith.constant 0 : index
    %c0_2 = arith.constant 0 : index
    %2 = vector.load %arg3[%c0_1, %c0_2] : memref<32x128xbf16, #tpu.memory_space<vmem>>, vector<32x128xbf16>
    %cst = arith.constant dense<0.000000e+00> : vector<16x128xf32>
    %3 = tpu.matmul %1, %2, %cst {dimension_numbers = #tpu.dot_dimension_numbers<[1], [0], [0], [1], [0, 0, 1, 1], [], []>} : vector<16x32xbf16>, vector<32x128xbf16>, vector<16x128xf32> -> vector<16x128xf32>
    %c0_3 = arith.constant 0 : index
    %c0_4 = arith.constant 0 : index
    %4 = vector.load %arg4[%c0_3, %c0_4] : memref<1x128xf32, #tpu.memory_space<vmem>>, vector<1x128xf32>
    %5 = vector.broadcast %4 : vector<1x128xf32> to vector<16x128xf32>
    %6 = arith.addf %3, %5 : vector<16x128xf32>
    %cst_5 = arith.constant 0.000000e+00 : f32
    %7 = vector.broadcast %cst_5 : f32 to vector<16x128xf32>
    %8 = arith.maximumf %6, %7 : vector<16x128xf32>
    %9 = arith.truncf %8 : vector<16x128xf32> to vector<16x128xbf16>
    %c0_6 = arith.constant 0 : index
    %c0_7 = arith.constant 0 : index
    %10 = vector.load %arg5[%c0_6, %c0_7] : memref<128x32xbf16, #tpu.memory_space<vmem>>, vector<128x32xbf16>
    %cst_8 = arith.constant dense<0.000000e+00> : vector<16x32xf32>
    %11 = tpu.matmul %9, %10, %cst_8 {dimension_numbers = #tpu.dot_dimension_numbers<[1], [0], [0], [1], [0, 0, 1, 1], [], []>} : vector<16x128xbf16>, vector<128x32xbf16>, vector<16x32xf32> -> vector<16x32xf32>
    %c0_i32 = arith.constant 0 : i32
    %12 = arith.cmpi eq, %arg1, %c0_i32 : i32
    %13 = arith.extui %12 : i1 to i32
    %c0_i32_9 = arith.constant 0 : i32
    %14 = arith.cmpi ne, %13, %c0_i32_9 : i32
    scf.if %14 {
      %c0_14 = arith.constant 0 : index
      %c0_15 = arith.constant 0 : index
      %21 = vector.load %arg7[%c0_14, %c0_15] : memref<16x32xf32, #tpu.memory_space<vmem>>, vector<16x32xf32>
      tpu.vector_store %arg7[%c0_14, %c0_15], %11 {strides = array<i32>} : memref<16x32xf32, #tpu.memory_space<vmem>>, vector<16x32xf32>,
    } else {
    }
    %c0_i32_10 = arith.constant 0 : i32
    %15 = arith.cmpi sgt, %arg1, %c0_i32_10 : i32
    %16 = arith.extui %15 : i1 to i32
    %c0_i32_11 = arith.constant 0 : i32
    %17 = arith.cmpi ne, %16, %c0_i32_11 : i32
    scf.if %17 {
      %c0_14 = arith.constant 0 : index
      %c0_15 = arith.constant 0 : index
      %21 = vector.load %arg7[%c0_14, %c0_15] : memref<16x32xf32, #tpu.memory_space<vmem>>, vector<16x32xf32>
      %22 = arith.addf %21, %11 : vector<16x32xf32>
      %c0_16 = arith.constant 0 : index
      %c0_17 = arith.constant 0 : index
      %23 = vector.load %arg7[%c0_16, %c0_17] : memref<16x32xf32, #tpu.memory_space<vmem>>, vector<16x32xf32>
      tpu.vector_store %arg7[%c0_16, %c0_17], %22 {strides = array<i32>} : memref<16x32xf32, #tpu.memory_space<vmem>>, vector<16x32xf32>,
    } else {
    }
    %c0_i32_12 = arith.constant 0 : i32
    %18 = arith.cmpi eq, %arg1, %c0_i32_12 : i32
    %19 = arith.extui %18 : i1 to i32
    %c0_i32_13 = arith.constant 0 : i32
    %20 = arith.cmpi ne, %19, %c0_i32_13 : i32
    scf.if %20 {
      %c0_14 = arith.constant 0 : index
      %c0_15 = arith.constant 0 : index
      %21 = vector.load %arg7[%c0_14, %c0_15] : memref<16x32xf32, #tpu.memory_space<vmem>>, vector<16x32xf32>
      %c0_16 = arith.constant 0 : index
      %c0_17 = arith.constant 0 : index
      %22 = vector.load %arg6[%c0_16, %c0_17] : memref<1x32xf32, #tpu.memory_space<vmem>>, vector<1x32xf32>
      %23 = vector.broadcast %22 : vector<1x32xf32> to vector<16x32xf32>
      %24 = arith.addf %21, %23 : vector<16x32xf32>
      %c0_18 = arith.constant 0 : index
      %c0_19 = arith.constant 0 : index
      %25 = vector.load %arg7[%c0_18, %c0_19] : memref<16x32xf32, #tpu.memory_space<vmem>>, vector<16x32xf32>
      tpu.vector_store %arg7[%c0_18, %c0_19], %24 {strides = array<i32>} : memref<16x32xf32, #tpu.memory_space<vmem>>, vector<16x32xf32>,
    } else {
    }
    return
  }
  func.func @transform_0(%arg0: i32, %arg1: i32) -> (i32, i32) {
    %c0_i32 = arith.constant 0 : i32
    %c0_i32_0 = arith.constant 0 : i32
    return %arg0, %c0_i32 : i32, i32
  }
  func.func @transform_1(%arg0: i32, %arg1: i32) -> (i32, i32) {
    %c0_i32 = arith.constant 0 : i32
    %c0_i32_0 = arith.constant 0 : i32
    return %c0_i32, %arg1 : i32, i32
  }
  func.func @transform_2(%arg0: i32, %arg1: i32) -> (i32, i32) {
    %c0_i32 = arith.constant 0 : i32
    %c0_i32_0 = arith.constant 0 : i32
    return %c0_i32, %arg1 : i32, i32
  }
  func.func @transform_3(%arg0: i32, %arg1: i32) -> (i32, i32) {
    %c0_i32 = arith.constant 0 : i32
    %c0_i32_0 = arith.constant 0 : i32
    return %arg1, %c0_i32 : i32, i32
  }
  func.func @transform_4(%arg0: i32, %arg1: i32) -> (i32, i32) {
    %c0_i32 = arith.constant 0 : i32
    %c0_i32_0 = arith.constant 0 : i32
    %c0_i32_1 = arith.constant 0 : i32
    return %c0_i32, %c0_i32_0 : i32, i32
  }
  func.func @transform_5(%arg0: i32, %arg1: i32) -> (i32, i32) {
    %c0_i32 = arith.constant 0 : i32
    %c0_i32_0 = arith.constant 0 : i32
    return %arg0, %c0_i32 : i32, i32
  }
}

</mosaic_0001>

<llo_original>
// kernel: _ffn_pallas.1
$region0: #{_ffn_pallas.1}
  #allocation0 [shape = 'u32[]', space=smem, size = 0x4, offset = 0x4, fixed_abs, tag = 'smem constant byte address 0x4 - core index']
  #allocation1 [shape = 'u32[72,128]{1,0:T(1,128)}', space=vmem, size = 0x9000, scoped, tag = 'internal scratch']
  %s0 = inlined_call_operand.vmem [shape: f32[16,32], index: 0, kind: input, shape index: {}]
  %s1 = inlined_call_operand.vmem [shape: bf16[32,128], index: 1, kind: input, shape index: {}]
  %s2 = inlined_call_operand.vmem [shape: f32[1,128], index: 2, kind: input, shape index: {}]
  %s3 = inlined_call_operand.vmem [shape: bf16[128,32], index: 3, kind: input, shape index: {}]
  %s4 = inlined_call_operand.vmem [shape: f32[1,32], index: 4, kind: input, shape index: {}]
  %s5 = inlined_call_operand.hbm [shape: f32[16,32], index: 5, kind: output, shape index: {}]
  %s6 = sld [smem:[#allocation0]]
  $region42: #{_ffn_pallas.1} parent=0
    _
  %s8 = ssub.s32 1, %s6
  %s9 = scalar_select 0, %s8, %s6
  $region1: #{_ffn_pallas.1} parent=0
    #allocation2 [shape = 'u8[8192]{0}', space=vmem, size = 0x2000, scoped, tag = 'output window, operand 0, single buffered']
    #allocation3 [shape = 's32[1]{0}', space=sflag, size = 0x4, scoped, tag = 'scoped memory for _ffn_pallas.1']
    %10 = vsyncpa [#allocation3], 0
    // Predicated region
    $region2: #{_ffn_pallas.1} parent=1 // pred_check
      _
    $region3: #{_ffn_pallas.1} parent=1 // pred_check_branch
      %12 = sbr.rel (0) target = $region5
    $region4: #{_ffn_pallas.1} parent=1 // pred_region
      _
    $region5: #{_ffn_pallas.1} parent=1 // pred_fallthru
      _
    // Predicated region
    $region6: #{_ffn_pallas.1} parent=1 // pred_check
      _
    $region7: #{_ffn_pallas.1} parent=1 // pred_check_branch
      %14 = sbr.rel (0) target = $region9
    $region8: #{_ffn_pallas.1} parent=1 // pred_region
      _
    $region9: #{_ffn_pallas.1} parent=1 // pred_fallthru
      _
    // Predicated region
    $region10: #{_ffn_pallas.1} parent=1 // pred_check
      _
    $region11: #{_ffn_pallas.1} parent=1 // pred_check_branch
      %16 = sbr.rel (0) target = $region13
    $region12: #{_ffn_pallas.1} parent=1 // pred_region
      _
    $region13: #{_ffn_pallas.1} parent=1 // pred_fallthru
      _
    // Predicated region
    $region14: #{_ffn_pallas.1} parent=1 // pred_check
      _
    $region15: #{_ffn_pallas.1} parent=1 // pred_check_branch
      %18 = sbr.rel (0) target = $region17
    $region16: #{_ffn_pallas.1} parent=1 // pred_region
      _
    $region17: #{_ffn_pallas.1} parent=1 // pred_fallthru
      _
    // Predicated region
    $region18: #{_ffn_pallas.1} parent=1 // pred_check
      _
    $region19: #{_ffn_pallas.1} parent=1 // pred_check_branch
      %20 = sbr.rel (0) target = $region21
    $region20: #{_ffn_pallas.1} parent=1 // pred_region
      _
    $region21: #{_ffn_pallas.1} parent=1 // pred_fallthru
      _
    %v22 = vld [vmem:[%s0] sm:$0xff]
    %v23 = vld [vmem:[%s0 + $0x8] sm:$0xff]
    %v24 = vpack.c.bf16 %v23, %v22
    %v25 = vld [vmem:[%s1] sm:$0xf]
    %v26 = vld [vmem:[%s1 + $0x4] sm:$0xf]
    %v27 = vld [vmem:[%s1 + $0x8] sm:$0xf]
    %v28 = vld [vmem:[%s1 + $0xc] sm:$0xf]
    %v29 = vld [vmem:[%s2] sm:$0x1]
    %v31 = vperm.slane %v29, 0
    %v37 = vunpack.c.l.b16 %v25
    %v38 = vunpack.c.l.b16 %v26
    %v39 = vunpack.c.l.b16 %v27
    %v40 = vunpack.c.l.b16 %v28
    %v41 = vpack.c.b16 %v38, %v37
    %v42 = vpack.c.b16 %v40, %v39
    %vm45 = vcmask 261120
    %v47 = vsel %vm45, %v24, 0
    %49 = vmatpush.bf16.msra.mxu0 0
    %50 = vmatpush.bf16.msra.mxu0 0
    %51 = vmatpush.bf16.msra.mxu0 0
    %52 = vmatpush.bf16.msra.mxu0 0
    %53 = vmatpush.bf16.msra.mxu0 0
    %54 = vmatpush.bf16.msra.mxu0 0
    %55 = vmatpush.bf16.msra.mxu0 %v42
    %56 = vmatpush.bf16.msra.mxu0 %v41
    %57 = vmatmul.bf16.gmra.mxu0 %v47
    %v58 = vpop.f32.mrf.mxu0
    %v59 = vadd.f32 %v31, %v58
    %v60 = vpop.f32.mrf.mxu0
    %v61 = vadd.f32 %v31, %v60
    %62 = vdwg.mxu0
    %v63 = vmax.f32 %v59, 0.0
    %v64 = vmax.f32 %v61, 0.0
    %v65 = vpack.c.bf16 %v64, %v63
    %v66 = vld [vmem:[%s3] sm:$0xf]
    %v67 = vld [vmem:[%s3 + $0x4] sm:$0xf]
    %v68 = vld [vmem:[%s3 + $0x8] sm:$0xf]
    %v69 = vld [vmem:[%s3 + $0xc] sm:$0xf]
    %v70 = vld [vmem:[%s3 + $0x10] sm:$0xf]
    %v71 = vld [vmem:[%s3 + $0x14] sm:$0xf]
    %v72 = vld [vmem:[%s3 + $0x18] sm:$0xf]
    %v73 = vld [vmem:[%s3 + $0x1c] sm:$0xf]
    %v74 = vld [vmem:[%s3 + $0x20] sm:$0xf]
    %v75 = vld [vmem:[%s3 + $0x24] sm:$0xf]
    %v76 = vld [vmem:[%s3 + $0x28] sm:$0xf]
    %v77 = vld [vmem:[%s3 + $0x2c] sm:$0xf]
    %v78 = vld [vmem:[%s3 + $0x30] sm:$0xf]
    %v79 = vld [vmem:[%s3 + $0x34] sm:$0xf]
    %v80 = vld [vmem:[%s3 + $0x38] sm:$0xf]
    %v81 = vld [vmem:[%s3 + $0x3c] sm:$0xf]
    %v98 = vunpack.c.l.b16 %v66
    %v99 = vunpack.c.l.b16 %v67
    %v100 = vunpack.c.l.b16 %v68
    %v101 = vunpack.c.l.b16 %v69
    %v102 = vunpack.c.l.b16 %v70
    %v103 = vunpack.c.l.b16 %v71
    %v104 = vunpack.c.l.b16 %v72
    %v105 = vunpack.c.l.b16 %v73
    %v106 = vunpack.c.l.b16 %v74
    %v107 = vunpack.c.l.b16 %v75
    %v108 = vunpack.c.l.b16 %v76
    %v109 = vunpack.c.l.b16 %v77
    %v110 = vunpack.c.l.b16 %v78
    %v111 = vunpack.c.l.b16 %v79
    %v112 = vunpack.c.l.b16 %v80
    %v113 = vunpack.c.l.b16 %v81
    %v114 = vpack.c.b16 %v99, %v98
    %v115 = vpack.c.b16 %v101, %v100
    %v116 = vpack.c.b16 %v103, %v102
    %v117 = vpack.c.b16 %v105, %v104
    %v118 = vpack.c.b16 %v107, %v106
    %v119 = vpack.c.b16 %v109, %v108
    %v120 = vpack.c.b16 %v111, %v110
    %v121 = vpack.c.b16 %v113, %v112
    %130 = vmatpush.bf16.msra.mxu0 %v121
    %131 = vmatpush.bf16.msra.mxu0 %v120
    %132 = vmatpush.bf16.msra.mxu0 %v119
    %133 = vmatpush.bf16.msra.mxu0 %v118
    %134 = vmatpush.bf16.msra.mxu0 %v117
    %135 = vmatpush.bf16.msra.mxu0 %v116
    %136 = vmatpush.bf16.msra.mxu0 %v115
    %137 = vmatpush.bf16.msra.mxu0 %v114
    %138 = vmatmul.bf16.gmra.mxu0 %v65
    %v139 = vpop.f32.mrf.mxu0
    %v140 = vadd.f32 0.0, %v139
    %v141 = vpop.f32.mrf.mxu0
    %v142 = vadd.f32 0.0, %v141
    %143 = vdwg.mxu0
    %p144 = scmp.eq.s32.totalorder 0, 0
    // Predicated region
    $region22: #{_ffn_pallas.1} parent=1 // pred_check
      %p145 = pneg %p144
    $region23: #{_ffn_pallas.1} parent=1 // pred_check_branch
      %147 = sbr.rel (%p145) target = $region25
    $region24: #{_ffn_pallas.1} parent=1 // pred_region
      %148 = vst.msk [vmem:[#allocation2] sm:$0xff] %vm45, %v140
      %149 = vst.msk [vmem:[#allocation2 + $0x8] sm:$0xff] %vm45, %v142
    $region25: #{_ffn_pallas.1} parent=1 // pred_fallthru
      _
    %p150 = scmp.gt.s32.totalorder 0, 0
    // Predicated region
    $region26: #{_ffn_pallas.1} parent=1 // pred_check
      %p151 = pneg %p150
    $region27: #{_ffn_pallas.1} parent=1 // pred_check_branch
      %153 = sbr.rel (%p151) target = $region29
    $region28: #{_ffn_pallas.1} parent=1 // pred_region
      %v154 = vld [vmem:[#allocation2] sm:$0xff]
      %v155 = vld [vmem:[#allocation2 + $0x8] sm:$0xff]
      %v156 = vadd.f32 %v154, %v140
      %v157 = vadd.f32 %v155, %v142
      %158 = vst.msk [vmem:[#allocation2] sm:$0xff] %vm45, %v156
      %159 = vst.msk [vmem:[#allocation2 + $0x8] sm:$0xff] %vm45, %v157
    $region29: #{_ffn_pallas.1} parent=1 // pred_fallthru
      _
    // Predicated region
    $region30: #{_ffn_pallas.1} parent=1 // pred_check
      %p160 = pneg %p144
    $region31: #{_ffn_pallas.1} parent=1 // pred_check_branch
      %162 = sbr.rel (%p160) target = $region33
    $region32: #{_ffn_pallas.1} parent=1 // pred_region
      %v163 = vld [vmem:[#allocation2] sm:$0xff]
      %v164 = vld [vmem:[#allocation2 + $0x8] sm:$0xff]
      %v165 = vld [vmem:[%s4] sm:$0x1]
      %v167 = vperm.slane %v165, 0
      %v169 = vadd.f32 %v163, %v167
      %v170 = vadd.f32 %v164, %v167
      %171 = vst.msk [vmem:[#allocation2] sm:$0xff] %vm45, %v169
      %172 = vst.msk [vmem:[#allocation2 + $0x8] sm:$0xff] %vm45, %v170
    $region33: #{_ffn_pallas.1} parent=1 // pred_fallthru
      _
    // Predicated region
    $region34: #{_ffn_pallas.1} parent=1 // pred_check
      _
    $region35: #{_ffn_pallas.1} parent=1 // pred_check_branch
      %174 = sbr.rel (0) target = $region37
    $region36: #{_ffn_pallas.1} parent=1 // pred_region
      %176 = vsyncadd [#allocation3], 0
      %s177 = sshll.u32 [#allocation2], 4
      %s178 = int_to_ptr.vmem [resolvable:$true] %s177
      %s179 = sshll.u32 %s5, 4
      %s180 = int_to_ptr.hbm [resolvable:$true] %s179
      %185 = dma.vmem_to_hbm [thread:$0]  %s178, 256, %s180, [#allocation3], 128, 128, 8
    $region37: #{_ffn_pallas.1} parent=1 // pred_fallthru
      _
    // Predicated region
    $region38: #{_ffn_pallas.1} parent=1 // pred_check
      _
    $region39: #{_ffn_pallas.1} parent=1 // pred_check_branch
      %187 = sbr.rel (0) target = $region41
    $region40: #{_ffn_pallas.1} parent=1 // pred_region
      %189 = dma.done [#allocation3], 256
    $region41: #{_ffn_pallas.1} parent=1 // pred_fallthru
      _
    %190 = vsyncpa [#allocation3], 1

</llo_original>
